<compile_context>
chip_gen: v6e
topology: v6e:2x2x1
jax: 0.10.0
libtpu: 0.0.40
codegen_flags: <defaults>
</compile_context>

<pallas_src>
import jax
import jax.numpy as jnp
from jax import lax
from jax.experimental import pallas as pl
from jax.experimental.pallas import tpu as pltpu


# ----------------------------- config ---------------------------------------
class Config:
    HIDDEN = 32
    NPOP = 4
    INEQ = True
    LSTM = False   # TODO(synk): recurrent Env path not implemented


OUT_DIM = 8


# ----------------------------- Pallas kernel --------------------------------
def actionnet_kernel(obs_ref, ineq_ref, gum_ref,          # per-tile activations / noise
                     w_env_ref, b_env_ref,                # Env encoder
                     w_ineq_ref, b_ineq_ref,              # fc_ineq
                     w_fc_ref, b_fc_ref,                  # fc over concat([s, ineq_h])
                     w_act_ref, b_act_ref,                # ConstDiscrete.fc1
                     pi_ref, idx_ref):
    f32 = jnp.float32

    # --- Env: s = relu(obs @ W_env + b_env) --------------------------------- (MXU)
    # (optional v6e/v7x refinement: cast obs/w_env to bf16 for this dot)
    s = jnp.dot(obs_ref[...], w_env_ref[...], preferred_element_type=f32)
    s = jnp.maximum(s + b_env_ref[...], 0.0)

    # --- ineq branch: relu(fc_ineq(ineq)) ------------------------------------ (VPU)
    # depth-NPOP (=4) contraction as broadcast FMAs -> no MXU push for this layer.
    ineq = ineq_ref[...]
    w_ineq = w_ineq_ref[...]
    ih = b_ineq_ref[...]                                   # (1, h) broadcasts up
    for k in range(w_ineq_ref.shape[0]):                   # static NPOP
        ih = ih + ineq[:, k:k + 1] * w_ineq[k:k + 1, :]
    ih = jnp.maximum(ih, 0.0)

    # --- fc over concat([s, ih]): single fused matmul ------------------------ (MXU)
    xcat = jnp.concatenate([s, ih], axis=1)                # (TB, 2h); 2h = 64 <= 128 lanes
    x = jnp.dot(xcat, w_fc_ref[...], preferred_element_type=f32) + b_fc_ref[...]
    x = jnp.maximum(x, 0.0)

    # --- ConstDiscrete: logits + categorical sample ---------------------------
    logits = jnp.dot(x, w_act_ref[...], preferred_element_type=f32) + b_act_ref[...]
    pi_ref[...] = logits

    # probs = softmax(logits) + 1e-3 ; Gumbel-max over log(probs) samples
    # proportionally even without renormalization (Categorical(probs=...)).
    m = jnp.max(logits, axis=-1, keepdims=True)
    e = jnp.exp(logits - m)
    inv = pl.reciprocal(jnp.sum(e, axis=-1, keepdims=True), approx=True)   # EUP slot
    probs = e * inv + 1e-3

    y = jnp.log(probs) + gum_ref[...]                      # per-tile Gumbel noise
    ymax = jnp.max(y, axis=-1, keepdims=True)
    iota = lax.broadcasted_iota(jnp.int32, y.shape, dimension=1)
    # Ties pick the LAST maximal index; measure-zero with continuous Gumbel noise.
    idx_ref[...] = jnp.max(jnp.where(y >= ymax, iota, -1), axis=-1, keepdims=True)


# ----------------------------- wrapper ---------------------------------------
def _round_up(x, m):
    return ((x + m - 1) // m) * m


def make_params(key, obs_dim, cfg, out_dim):
    """Deterministic params mimicking torch.nn.Linear default init
    (uniform +/- 1/sqrt(fan_in)); stored as (in, out) for the kernel."""
    h = cfg.HIDDEN

    def linear(k, fan_in, fan_out):
        kw, kb = jax.random.split(k)
        bound = 1.0 / jnp.sqrt(jnp.float32(fan_in))
        w = jax.random.uniform(kw, (fan_in, fan_out), jnp.float32, -bound, bound)
        b = jax.random.uniform(kb, (1, fan_out), jnp.float32, -bound, bound)
        return w, b

    k_env, k_ineq, k_fc, k_act = jax.random.split(key, 4)
    w_env, b_env = linear(k_env, obs_dim, h)
    w_ineq, b_ineq = linear(k_ineq, cfg.NPOP, h)
    w_fc, b_fc = linear(k_fc, 2 * h, h)          # fc over concat([s, ineq_h])
    w_act, b_act = linear(k_act, h, out_dim)
    return dict(w_env=w_env, b_env=b_env,
                w_ineq=w_ineq, b_ineq=b_ineq,
                w_fc=w_fc, b_fc=b_fc,
                w_act=w_act, b_act=b_act)


def action_net_forward(params, obs_nchw, ineq, rng_key):
    f32 = jnp.float32
    B = obs_nchw.shape[0]
    obs = obs_nchw.reshape(B, -1).astype(f32)     # layout: flatten NCHW -> (B, C*H*W)
    D = obs.shape[1]
    ineq = ineq.astype(f32)
    npop = ineq.shape[1]
    h = params["w_env"].shape[1]
    out_dim = params["w_act"].shape[1]

    # ---- batch padding / tiling ------------------------------------------------
    # Pad rows to a sublane multiple; tile at <= 256 rows so the double-buffered
    # obs stream (2 x TB x D x 4 B) + resident weights stay well under the scoped
    # VMEM defaults on v5e/v6e and v7x's 64 MiB physical VMEM.
    B8 = _round_up(B, 8)
    TB = min(256, B8)
    Bp = _round_up(B8, TB)
    pad = Bp - B
    obs_p = jnp.pad(obs, ((0, pad), (0, 0)))
    ineq_p = jnp.pad(ineq, ((0, pad), (0, 0)))
    # Gumbel noise computed outside the kernel (see TODO) and blocked per tile,
    # so every tile / core gets an independent noise slab.
    gum = jax.random.gumbel(rng_key, (Bp, out_dim), f32)

    grid = (Bp // TB,)
    row = lambda i: (i, 0)      # batch-tiled arrays
    rep = lambda i: (0, 0)      # weights/biases: VMEM-resident across the grid

    in_specs = [
        pl.BlockSpec((TB, D), row),            # obs
        pl.BlockSpec((TB, npop), row),         # ineq
        pl.BlockSpec((TB, out_dim), row),      # gumbel noise
        pl.BlockSpec((D, h), rep),             # w_env
        pl.BlockSpec((1, h), rep),             # b_env
        pl.BlockSpec((npop, h), rep),          # w_ineq
        pl.BlockSpec((1, h), rep),             # b_ineq
        pl.BlockSpec((2 * h, h), rep),         # w_fc (fused concat weight)
        pl.BlockSpec((1, h), rep),             # b_fc
        pl.BlockSpec((h, out_dim), rep),       # w_act
        pl.BlockSpec((1, out_dim), rep),       # b_act
    ]
    out_specs = (pl.BlockSpec((TB, out_dim), row),
                 pl.BlockSpec((TB, 1), row))

    pi, idx = pl.pallas_call(
        actionnet_kernel,
        out_shape=(jax.ShapeDtypeStruct((Bp, out_dim), f32),
                   jax.ShapeDtypeStruct((Bp, 1), jnp.int32)),
        grid=grid,
        in_specs=in_specs,
        out_specs=out_specs,
        compiler_params=pltpu.CompilerParams(
            dimension_semantics=("parallel",)),   # v7x: shard batch tiles over 2 TCs
    )(obs_p, ineq_p, gum,
      params["w_env"], params["b_env"],
      params["w_ineq"], params["b_ineq"],
      params["w_fc"], params["b_fc"],
      params["w_act"], params["b_act"])

    return pi[:B], idx[:B]


# ----------------------------- main ------------------------------------------
if __name__ == "__main__":
    cfg = Config()
    B, C, H, W = 2, 4, 16, 16
    obs_dim = C * H * W

    key = jax.random.PRNGKey(0)
    k_params, k_obs, k_ineq, k_sample = jax.random.split(key, 4)

    params = make_params(k_params, obs_dim, cfg, OUT_DIM)
    obs = jax.random.normal(k_obs, (B, C, H, W), jnp.float32)
    ineq = jax.random.normal(k_ineq, (B, cfg.NPOP), jnp.float32)

    pi, action_idx = action_net_forward(params, obs, ineq, k_sample)
    jax.block_until_ready((pi, action_idx))

    assert pi.shape == (B, OUT_DIM) and pi.dtype == jnp.float32
    assert action_idx.shape == (B, 1) and action_idx.dtype == jnp.int32
    assert bool(jnp.all(action_idx >= 0)) and bool(jnp.all(action_idx < OUT_DIM))
    print("KERNEL_OK")
</pallas_src>

<mosaic_0001>
module attributes {stable_mosaic.version = 11 : i64} {
  func.func @actionnet_kernel(%arg0: i32, %arg1: memref<8x1024xf32, #tpu.memory_space<vmem>>, %arg2: memref<8x4xf32, #tpu.memory_space<vmem>>, %arg3: memref<8x8xf32, #tpu.memory_space<vmem>>, %arg4: memref<1024x32xf32, #tpu.memory_space<vmem>>, %arg5: memref<1x32xf32, #tpu.memory_space<vmem>>, %arg6: memref<4x32xf32, #tpu.memory_space<vmem>>, %arg7: memref<1x32xf32, #tpu.memory_space<vmem>>, %arg8: memref<64x32xf32, #tpu.memory_space<vmem>>, %arg9: memref<1x32xf32, #tpu.memory_space<vmem>>, %arg10: memref<32x8xf32, #tpu.memory_space<vmem>>, %arg11: memref<1x8xf32, #tpu.memory_space<vmem>>, %arg12: memref<8x8xf32, #tpu.memory_space<vmem>>, %arg13: memref<8x1xi32, #tpu.memory_space<vmem>>) attributes {dimension_semantics = [#tpu.dimension_semantics<parallel>], iteration_bounds = array<i64: 1>, scalar_prefetch = 0 : i64, scratch_operands = 0 : i64, tpu.core_type = #tpu.core_type<tc>, window_params = [{transform_indices = @transform_0, window_bounds = array<i64: 8, 1024>}, {transform_indices = @transform_1, window_bounds = array<i64: 8, 4>}, {transform_indices = @transform_2, window_bounds = array<i64: 8, 8>}, {pipeline_mode = #tpu.pipeline_mode<synchronous>, transform_indices = @transform_3, window_bounds = array<i64: 1024, 32>}, {pipeline_mode = #tpu.pipeline_mode<synchronous>, transform_indices = @transform_4, window_bounds = array<i64: 1, 32>}, {pipeline_mode = #tpu.pipeline_mode<synchronous>, transform_indices = @transform_5, window_bounds = array<i64: 4, 32>}, {pipeline_mode = #tpu.pipeline_mode<synchronous>, transform_indices = @transform_6, window_bounds = array<i64: 1, 32>}, {pipeline_mode = #tpu.pipeline_mode<synchronous>, transform_indices = @transform_7, window_bounds = array<i64: 64, 32>}, {pipeline_mode = #tpu.pipeline_mode<synchronous>, transform_indices = @transform_8, window_bounds = array<i64: 1, 32>}, {pipeline_mode = #tpu.pipeline_mode<synchronous>, transform_indices = @transform_9, window_bounds = array<i64: 32, 8>}, {pipeline_mode = #tpu.pipeline_mode<synchronous>, transform_indices = @transform_10, window_bounds = array<i64: 1, 8>}, {transform_indices = @transform_11, window_bounds = array<i64: 8, 8>}, {transform_indices = @transform_12, window_bounds = array<i64: 8, 1>}]} {
    %c0 = arith.constant 0 : index
    %c0_0 = arith.constant 0 : index
    %0 = vector.load %arg1[%c0, %c0_0] : memref<8x1024xf32, #tpu.memory_space<vmem>>, vector<8x1024xf32>
    %c0_1 = arith.constant 0 : index
    %c0_2 = arith.constant 0 : index
    %1 = vector.load %arg4[%c0_1, %c0_2] : memref<1024x32xf32, #tpu.memory_space<vmem>>, vector<1024x32xf32>
    %cst = arith.constant dense<0.000000e+00> : vector<8x32xf32>
    %2 = tpu.matmul %0, %1, %cst {dimension_numbers = #tpu.dot_dimension_numbers<[1], [0], [0], [1], [0, 0, 1, 1], [], []>} : vector<8x1024xf32>, vector<1024x32xf32>, vector<8x32xf32> -> vector<8x32xf32>
    %c0_3 = arith.constant 0 : index
    %c0_4 = arith.constant 0 : index
    %3 = vector.load %arg5[%c0_3, %c0_4] : memref<1x32xf32, #tpu.memory_space<vmem>>, vector<1x32xf32>
    %4 = vector.broadcast %3 : vector<1x32xf32> to vector<8x32xf32>
    %5 = arith.addf %2, %4 : vector<8x32xf32>
    %cst_5 = arith.constant 0.000000e+00 : f32
    %6 = vector.broadcast %cst_5 : f32 to vector<8x32xf32>
    %7 = arith.maximumf %5, %6 : vector<8x32xf32>
    %c0_6 = arith.constant 0 : index
    %c0_7 = arith.constant 0 : index
    %8 = vector.load %arg2[%c0_6, %c0_7] : memref<8x4xf32, #tpu.memory_space<vmem>>, vector<8x4xf32>
    %c0_8 = arith.constant 0 : index
    %c0_9 = arith.constant 0 : index
    %9 = vector.load %arg6[%c0_8, %c0_9] : memref<4x32xf32, #tpu.memory_space<vmem>>, vector<4x32xf32>
    %c0_10 = arith.constant 0 : index
    %c0_11 = arith.constant 0 : index
    %10 = vector.load %arg7[%c0_10, %c0_11] : memref<1x32xf32, #tpu.memory_space<vmem>>, vector<1x32xf32>
    %11 = vector.extract_strided_slice %8 {offsets = [0, 0], sizes = [8, 1], strides = [1, 1]} : vector<8x4xf32> to vector<8x1xf32>
    %12 = vector.extract_strided_slice %9 {offsets = [0, 0], sizes = [1, 32], strides = [1, 1]} : vector<4x32xf32> to vector<1x32xf32>
    %13 = vector.broadcast %11 : vector<8x1xf32> to vector<8x32xf32>
    %14 = vector.broadcast %12 : vector<1x32xf32> to vector<8x32xf32>
    %15 = arith.mulf %13, %14 : vector<8x32xf32>
    %16 = vector.broadcast %10 : vector<1x32xf32> to vector<8x32xf32>
    %17 = arith.addf %16, %15 : vector<8x32xf32>
    %18 = vector.extract_strided_slice %8 {offsets = [0, 1], sizes = [8, 1], strides = [1, 1]} : vector<8x4xf32> to vector<8x1xf32>
    %19 = vector.extract_strided_slice %9 {offsets = [1, 0], sizes = [1, 32], strides = [1, 1]} : vector<4x32xf32> to vector<1x32xf32>
    %20 = vector.broadcast %18 : vector<8x1xf32> to vector<8x32xf32>
    %21 = vector.broadcast %19 : vector<1x32xf32> to vector<8x32xf32>
    %22 = arith.mulf %20, %21 : vector<8x32xf32>
    %23 = arith.addf %17, %22 : vector<8x32xf32>
    %24 = vector.extract_strided_slice %8 {offsets = [0, 2], sizes = [8, 1], strides = [1, 1]} : vector<8x4xf32> to vector<8x1xf32>
    %25 = vector.extract_strided_slice %9 {offsets = [2, 0], sizes = [1, 32], strides = [1, 1]} : vector<4x32xf32> to vector<1x32xf32>
    %26 = vector.broadcast %24 : vector<8x1xf32> to vector<8x32xf32>
    %27 = vector.broadcast %25 : vector<1x32xf32> to vector<8x32xf32>
    %28 = arith.mulf %26, %27 : vector<8x32xf32>
    %29 = arith.addf %23, %28 : vector<8x32xf32>
    %30 = vector.extract_strided_slice %8 {offsets = [0, 3], sizes = [8, 1], strides = [1, 1]} : vector<8x4xf32> to vector<8x1xf32>
    %31 = vector.extract_strided_slice %9 {offsets = [3, 0], sizes = [1, 32], strides = [1, 1]} : vector<4x32xf32> to vector<1x32xf32>
    %32 = vector.broadcast %30 : vector<8x1xf32> to vector<8x32xf32>
    %33 = vector.broadcast %31 : vector<1x32xf32> to vector<8x32xf32>
    %34 = arith.mulf %32, %33 : vector<8x32xf32>
    %35 = arith.addf %29, %34 : vector<8x32xf32>
    %cst_12 = arith.constant 0.000000e+00 : f32
    %36 = vector.broadcast %cst_12 : f32 to vector<8x32xf32>
    %37 = arith.maximumf %35, %36 : vector<8x32xf32>
    %38 = tpu.concatenate %7, %37 in 1 : vector<8x32xf32>, vector<8x32xf32> -> vector<8x64xf32>
    %c0_13 = arith.constant 0 : index
    %c0_14 = arith.constant 0 : index
    %39 = vector.load %arg8[%c0_13, %c0_14] : memref<64x32xf32, #tpu.memory_space<vmem>>, vector<64x32xf32>
    %cst_15 = arith.constant dense<0.000000e+00> : vector<8x32xf32>
    %40 = tpu.matmul %38, %39, %cst_15 {dimension_numbers = #tpu.dot_dimension_numbers<[1], [0], [0], [1], [0, 0, 1, 1], [], []>} : vector<8x64xf32>, vector<64x32xf32>, vector<8x32xf32> -> vector<8x32xf32>
    %c0_16 = arith.constant 0 : index
    %c0_17 = arith.constant 0 : index
    %41 = vector.load %arg9[%c0_16, %c0_17] : memref<1x32xf32, #tpu.memory_space<vmem>>, vector<1x32xf32>
    %42 = vector.broadcast %41 : vector<1x32xf32> to vector<8x32xf32>
    %43 = arith.addf %40, %42 : vector<8x32xf32>
    %cst_18 = arith.constant 0.000000e+00 : f32
    %44 = vector.broadcast %cst_18 : f32 to vector<8x32xf32>
    %45 = arith.maximumf %43, %44 : vector<8x32xf32>
    %c0_19 = arith.constant 0 : index
    %c0_20 = arith.constant 0 : index
    %46 = vector.load %arg10[%c0_19, %c0_20] : memref<32x8xf32, #tpu.memory_space<vmem>>, vector<32x8xf32>
    %cst_21 = arith.constant dense<0.000000e+00> : vector<8x8xf32>
    %47 = tpu.matmul %45, %46, %cst_21 {dimension_numbers = #tpu.dot_dimension_numbers<[1], [0], [0], [1], [0, 0, 1, 1], [], []>} : vector<8x32xf32>, vector<32x8xf32>, vector<8x8xf32> -> vector<8x8xf32>
    %c0_22 = arith.constant 0 : index
    %c0_23 = arith.constant 0 : index
    %48 = vector.load %arg11[%c0_22, %c0_23] : memref<1x8xf32, #tpu.memory_space<vmem>>, vector<1x8xf32>
    %49 = vector.broadcast %48 : vector<1x8xf32> to vector<8x8xf32>
    %50 = arith.addf %47, %49 : vector<8x8xf32>
    %c0_24 = arith.constant 0 : index
    %c0_25 = arith.constant 0 : index
    %51 = vector.load %arg12[%c0_24, %c0_25] : memref<8x8xf32, #tpu.memory_space<vmem>>, vector<8x8xf32>
    tpu.vector_store %arg12[%c0_24, %c0_25], %50 {strides = array<i32>} : memref<8x8xf32, #tpu.memory_space<vmem>>, vector<8x8xf32>,
    %cst_26 = arith.constant dense<0xFF800000> : vector<8xf32>
    %52 = vector.multi_reduction <maximumf>, %50, %cst_26 [1] : vector<8x8xf32> to vector<8xf32>
    %53 = vector.shape_cast %52 : vector<8xf32> to vector<8x1xf32>
    %54 = vector.broadcast %53 : vector<8x1xf32> to vector<8x8xf32>
    %55 = arith.subf %50, %54 : vector<8x8xf32>
    %56 = math.exp %55 : vector<8x8xf32>
    %cst_27 = arith.constant dense<0.000000e+00> : vector<8xf32>
    %57 = vector.multi_reduction <add>, %56, %cst_27 [1] : vector<8x8xf32> to vector<8xf32>
    %58 = vector.shape_cast %57 : vector<8xf32> to vector<8x1xf32>
    %59 = tpu.reciprocal %58 {approx = true} : vector<8x1xf32> -> vector<8x1xf32>
    %60 = vector.broadcast %59 : vector<8x1xf32> to vector<8x8xf32>
    %61 = arith.mulf %56, %60 : vector<8x8xf32>
    %cst_28 = arith.constant 1.000000e-03 : f32
    %62 = vector.broadcast %cst_28 : f32 to vector<8x8xf32>
    %63 = arith.addf %61, %62 : vector<8x8xf32>
    %64 = math.log %63 : vector<8x8xf32>
    %c0_29 = arith.constant 0 : index
    %c0_30 = arith.constant 0 : index
    %65 = vector.load %arg3[%c0_29, %c0_30] : memref<8x8xf32, #tpu.memory_space<vmem>>, vector<8x8xf32>
    %66 = arith.addf %64, %65 : vector<8x8xf32>
    %cst_31 = arith.constant dense<0xFF800000> : vector<8xf32>
    %67 = vector.multi_reduction <maximumf>, %66, %cst_31 [1] : vector<8x8xf32> to vector<8xf32>
    %68 = vector.shape_cast %67 : vector<8xf32> to vector<8x1xf32>
    %69 = tpu.iota {dimensions = array<i32: 1>} : vector<8x8xi32>
    %70 = vector.broadcast %68 : vector<8x1xf32> to vector<8x8xf32>
    %71 = arith.cmpf oge, %66, %70 : vector<8x8xf32>
    %c-1_i32 = arith.constant -1 : i32
    %72 = vector.broadcast %c-1_i32 : i32 to vector<8x8xi32>
    %73 = arith.select %71, %69, %72 : vector<8x8xi1>, vector<8x8xi32>
    %cst_32 = arith.constant dense<-2147483648> : vector<8xi32>
    %74 = vector.multi_reduction <maxsi>, %73, %cst_32 [1] : vector<8x8xi32> to vector<8xi32>
    %75 = vector.shape_cast %74 : vector<8xi32> to vector<8x1xi32>
    %c0_33 = arith.constant 0 : index
    %c0_34 = arith.constant 0 : index
    %76 = vector.load %arg13[%c0_33, %c0_34] : memref<8x1xi32, #tpu.memory_space<vmem>>, vector<8x1xi32>
    tpu.vector_store %arg13[%c0_33, %c0_34], %75 {strides = array<i32>} : memref<8x1xi32, #tpu.memory_space<vmem>>, vector<8x1xi32>,
    return
  }
  func.func @transform_0(%arg0: i32) -> (i32, i32) {
    %c0_i32 = arith.constant 0 : i32
    %c0_i32_0 = arith.constant 0 : i32
    return %arg0, %c0_i32 : i32, i32
  }
  func.func @transform_1(%arg0: i32) -> (i32, i32) {
    %c0_i32 = arith.constant 0 : i32
    %c0_i32_0 = arith.constant 0 : i32
    return %arg0, %c0_i32 : i32, i32
  }
  func.func @transform_2(%arg0: i32) -> (i32, i32) {
    %c0_i32 = arith.constant 0 : i32
    %c0_i32_0 = arith.constant 0 : i32
    return %arg0, %c0_i32 : i32, i32
  }
  func.func @transform_3(%arg0: i32) -> (i32, i32) {
    %c0_i32 = arith.constant 0 : i32
    %c0_i32_0 = arith.constant 0 : i32
    %c0_i32_1 = arith.constant 0 : i32
    return %c0_i32, %c0_i32_0 : i32, i32
  }
  func.func @transform_4(%arg0: i32) -> (i32, i32) {
    %c0_i32 = arith.constant 0 : i32
    %c0_i32_0 = arith.constant 0 : i32
    %c0_i32_1 = arith.constant 0 : i32
    return %c0_i32, %c0_i32_0 : i32, i32
  }
  func.func @transform_5(%arg0: i32) -> (i32, i32) {
    %c0_i32 = arith.constant 0 : i32
    %c0_i32_0 = arith.constant 0 : i32
    %c0_i32_1 = arith.constant 0 : i32
    return %c0_i32, %c0_i32_0 : i32, i32
  }
  func.func @transform_6(%arg0: i32) -> (i32, i32) {
    %c0_i32 = arith.constant 0 : i32
    %c0_i32_0 = arith.constant 0 : i32
    %c0_i32_1 = arith.constant 0 : i32
    return %c0_i32, %c0_i32_0 : i32, i32
  }
  func.func @transform_7(%arg0: i32) -> (i32, i32) {
    %c0_i32 = arith.constant 0 : i32
    %c0_i32_0 = arith.constant 0 : i32
    %c0_i32_1 = arith.constant 0 : i32
    return %c0_i32, %c0_i32_0 : i32, i32
  }
  func.func @transform_8(%arg0: i32) -> (i32, i32) {
    %c0_i32 = arith.constant 0 : i32
    %c0_i32_0 = arith.constant 0 : i32
    %c0_i32_1 = arith.constant 0 : i32
    return %c0_i32, %c0_i32_0 : i32, i32
  }
  func.func @transform_9(%arg0: i32) -> (i32, i32) {
    %c0_i32 = arith.constant 0 : i32
    %c0_i32_0 = arith.constant 0 : i32
    %c0_i32_1 = arith.constant 0 : i32
    return %c0_i32, %c0_i32_0 : i32, i32
  }
  func.func @transform_10(%arg0: i32) -> (i32, i32) {
    %c0_i32 = arith.constant 0 : i32
    %c0_i32_0 = arith.constant 0 : i32
    %c0_i32_1 = arith.constant 0 : i32
    return %c0_i32, %c0_i32_0 : i32, i32
  }
  func.func @transform_11(%arg0: i32) -> (i32, i32) {
    %c0_i32 = arith.constant 0 : i32
    %c0_i32_0 = arith.constant 0 : i32
    return %arg0, %c0_i32 : i32, i32
  }
  func.func @transform_12(%arg0: i32) -> (i32, i32) {
    %c0_i32 = arith.constant 0 : i32
    %c0_i32_0 = arith.constant 0 : i32
    return %arg0, %c0_i32 : i32, i32
  }
}

</mosaic_0001>

<llo_original>
// kernel: tpu_custom_call.1
$region0: #{tpu_custom_call.1}
  #allocation0 [shape = 'u32[]', space=smem, size = 0x4, offset = 0x4, fixed_abs, tag = 'smem constant byte address 0x4 - core index']
  #allocation1 [shape = 'u32[144,128]{1,0:T(1,128)}', space=vmem, size = 0x12000, scoped, tag = 'internal scratch']
  %s0 = inlined_call_operand.vmem [shape: f32[8,1024], index: 0, kind: input, shape index: {}]
  %s1 = inlined_call_operand.vmem [shape: f32[8,4], index: 1, kind: input, shape index: {}]
  %s2 = inlined_call_operand.vmem [shape: f32[8,8], index: 2, kind: input, shape index: {}]
  %s3 = inlined_call_operand.vmem [shape: f32[1024,32], index: 3, kind: input, shape index: {}]
  %s4 = inlined_call_operand.vmem [shape: f32[1,32], index: 4, kind: input, shape index: {}]
  %s5 = inlined_call_operand.vmem [shape: f32[4,32], index: 5, kind: input, shape index: {}]
  %s6 = inlined_call_operand.vmem [shape: f32[1,32], index: 6, kind: input, shape index: {}]
  %s7 = inlined_call_operand.vmem [shape: f32[64,32], index: 7, kind: input, shape index: {}]
  %s8 = inlined_call_operand.vmem [shape: f32[1,32], index: 8, kind: input, shape index: {}]
  %s9 = inlined_call_operand.vmem [shape: f32[32,8], index: 9, kind: input, shape index: {}]
  %s10 = inlined_call_operand.vmem [shape: f32[1,8], index: 10, kind: input, shape index: {}]
  %s11 = inlined_call_operand.hbm [shape: f32[8,8], index: 11, kind: output, shape index: {0}]
  %s12 = inlined_call_operand.vmem [shape: s32[8,1], index: 12, kind: output, shape index: {1}]
  %13 = xla_tuple %s11, %s12
  %s14 = sld [smem:[#allocation0]]
  $region62: #{tpu_custom_call.1} parent=0
    _
  %s16 = ssub.s32 1, %s14
  %s17 = scalar_select 0, %s16, %s14
  $region1: #{tpu_custom_call.1} parent=0
    #allocation2 [shape = 'u8[4096]{0}', space=vmem, size = 0x1000, scoped, tag = 'output window, operand 0, single buffered']
    #allocation3 [shape = 's32[1]{0}', space=sflag, size = 0x4, scoped, tag = 'scoped memory for tpu_custom_call.1']
    %18 = vsyncpa [#allocation3], 0
    // Predicated region
    $region2: #{tpu_custom_call.1} parent=1 // pred_check
      _
    $region3: #{tpu_custom_call.1} parent=1 // pred_check_branch
      %20 = sbr.rel (0) target = $region5
    $region4: #{tpu_custom_call.1} parent=1 // pred_region
      _
    $region5: #{tpu_custom_call.1} parent=1 // pred_fallthru
      _
    // Predicated region
    $region6: #{tpu_custom_call.1} parent=1 // pred_check
      _
    $region7: #{tpu_custom_call.1} parent=1 // pred_check_branch
      %22 = sbr.rel (0) target = $region9
    $region8: #{tpu_custom_call.1} parent=1 // pred_region
      _
    $region9: #{tpu_custom_call.1} parent=1 // pred_fallthru
      _
    // Predicated region
    $region10: #{tpu_custom_call.1} parent=1 // pred_check
      _
    $region11: #{tpu_custom_call.1} parent=1 // pred_check_branch
      %24 = sbr.rel (0) target = $region13
    $region12: #{tpu_custom_call.1} parent=1 // pred_region
      _
    $region13: #{tpu_custom_call.1} parent=1 // pred_fallthru
      _
    // Predicated region
    $region14: #{tpu_custom_call.1} parent=1 // pred_check
      _
    $region15: #{tpu_custom_call.1} parent=1 // pred_check_branch
      %26 = sbr.rel (0) target = $region17
    $region16: #{tpu_custom_call.1} parent=1 // pred_region
      _
    $region17: #{tpu_custom_call.1} parent=1 // pred_fallthru
      _
    // Predicated region
    $region18: #{tpu_custom_call.1} parent=1 // pred_check
      _
    $region19: #{tpu_custom_call.1} parent=1 // pred_check_branch
      %28 = sbr.rel (0) target = $region21
    $region20: #{tpu_custom_call.1} parent=1 // pred_region
      _
    $region21: #{tpu_custom_call.1} parent=1 // pred_fallthru
      _
    // Predicated region
    $region22: #{tpu_custom_call.1} parent=1 // pred_check
      _
    $region23: #{tpu_custom_call.1} parent=1 // pred_check_branch
      %30 = sbr.rel (0) target = $region25
    $region24: #{tpu_custom_call.1} parent=1 // pred_region
      _
    $region25: #{tpu_custom_call.1} parent=1 // pred_fallthru
      _
    // Predicated region
    $region26: #{tpu_custom_call.1} parent=1 // pred_check
      _
    $region27: #{tpu_custom_call.1} parent=1 // pred_check_branch
      %32 = sbr.rel (0) target = $region29
    $region28: #{tpu_custom_call.1} parent=1 // pred_region
      _
    $region29: #{tpu_custom_call.1} parent=1 // pred_fallthru
      _
    // Predicated region
    $region30: #{tpu_custom_call.1} parent=1 // pred_check
      _
    $region31: #{tpu_custom_call.1} parent=1 // pred_check_branch
      %34 = sbr.rel (0) target = $region33
    $region32: #{tpu_custom_call.1} parent=1 // pred_region
      _
    $region33: #{tpu_custom_call.1} parent=1 // pred_fallthru
      _
    // Predicated region
    $region34: #{tpu_custom_call.1} parent=1 // pred_check
      _
    $region35: #{tpu_custom_call.1} parent=1 // pred_check_branch
      %36 = sbr.rel (0) target = $region37
    $region36: #{tpu_custom_call.1} parent=1 // pred_region
      _
    $region37: #{tpu_custom_call.1} parent=1 // pred_fallthru
      _
    // Predicated region
    $region38: #{tpu_custom_call.1} parent=1 // pred_check
      _
    $region39: #{tpu_custom_call.1} parent=1 // pred_check_branch
      %38 = sbr.rel (0) target = $region41
    $region40: #{tpu_custom_call.1} parent=1 // pred_region
      _
    $region41: #{tpu_custom_call.1} parent=1 // pred_fallthru
      _
    // Predicated region
    $region42: #{tpu_custom_call.1} parent=1 // pred_check
      _
    $region43: #{tpu_custom_call.1} parent=1 // pred_check_branch
      %40 = sbr.rel (0) target = $region45
    $region44: #{tpu_custom_call.1} parent=1 // pred_region
      _
    $region45: #{tpu_custom_call.1} parent=1 // pred_fallthru
      _
    %v41 = vld [vmem:[%s0] sm:$0xff]
    %v42 = vld [vmem:[%s0 + $0x8] sm:$0xff]
    %v43 = vld [vmem:[%s0 + $0x10] sm:$0xff]
    %v44 = vld [vmem:[%s0 + $0x18] sm:$0xff]
    %v45 = vld [vmem:[%s0 + $0x20] sm:$0xff]
    %v46 = vld [vmem:[%s0 + $0x28] sm:$0xff]
    %v47 = vld [vmem:[%s0 + $0x30] sm:$0xff]
    %v48 = vld [vmem:[%s0 + $0x38] sm:$0xff]
    %v49 = vld [vmem:[%s3] sm:$0xff]
    %v50 = vld [vmem:[%s3 + $0x8] sm:$0xff]
    %v51 = vld [vmem:[%s3 + $0x10] sm:$0xff]
    %v52 = vld [vmem:[%s3 + $0x18] sm:$0xff]
    %v53 = vld [vmem:[%s3 + $0x20] sm:$0xff]
    %v54 = vld [vmem:[%s3 + $0x28] sm:$0xff]
    %v55 = vld [vmem:[%s3 + $0x30] sm:$0xff]
    %v56 = vld [vmem:[%s3 + $0x38] sm:$0xff]
    %v57 = vld [vmem:[%s3 + $0x40] sm:$0xff]
    %v58 = vld [vmem:[%s3 + $0x48] sm:$0xff]
    %v59 = vld [vmem:[%s3 + $0x50] sm:$0xff]
    %v60 = vld [vmem:[%s3 + $0x58] sm:$0xff]
    %v61 = vld [vmem:[%s3 + $0x60] sm:$0xff]
    %v62 = vld [vmem:[%s3 + $0x68] sm:$0xff]
    %v63 = vld [vmem:[%s3 + $0x70] sm:$0xff]
    %v64 = vld [vmem:[%s3 + $0x78] sm:$0xff]
    %v65 = vld [vmem:[%s3 + $0x80] sm:$0xff]
    %v66 = vld [vmem:[%s3 + $0x88] sm:$0xff]
    %v67 = vld [vmem:[%s3 + $0x90] sm:$0xff]
    %v68 = vld [vmem:[%s3 + $0x98] sm:$0xff]
    %v69 = vld [vmem:[%s3 + $0xa0] sm:$0xff]
    %v70 = vld [vmem:[%s3 + $0xa8] sm:$0xff]
    %v71 = vld [vmem:[%s3 + $0xb0] sm:$0xff]
    %v72 = vld [vmem:[%s3 + $0xb8] sm:$0xff]
    %v73 = vld [vmem:[%s3 + $0xc0] sm:$0xff]
    %v74 = vld [vmem:[%s3 + $0xc8] sm:$0xff]
    %v75 = vld [vmem:[%s3 + $0xd0] sm:$0xff]
    %v76 = vld [vmem:[%s3 + $0xd8] sm:$0xff]
    %v77 = vld [vmem:[%s3 + $0xe0] sm:$0xff]
    %v78 = vld [vmem:[%s3 + $0xe8] sm:$0xff]
    %v79 = vld [vmem:[%s3 + $0xf0] sm:$0xff]
    %v80 = vld [vmem:[%s3 + $0xf8] sm:$0xff]
    %v81 = vld [vmem:[%s3 + $0x100] sm:$0xff]
    %v82 = vld [vmem:[%s3 + $0x108] sm:$0xff]
    %v83 = vld [vmem:[%s3 + $0x110] sm:$0xff]
    %v84 = vld [vmem:[%s3 + $0x118] sm:$0xff]
    %v85 = vld [vmem:[%s3 + $0x120] sm:$0xff]
    %v86 = vld [vmem:[%s3 + $0x128] sm:$0xff]
    %v87 = vld [vmem:[%s3 + $0x130] sm:$0xff]
    %v88 = vld [vmem:[%s3 + $0x138] sm:$0xff]
    %v89 = vld [vmem:[%s3 + $0x140] sm:$0xff]
    %v90 = vld [vmem:[%s3 + $0x148] sm:$0xff]
    %v91 = vld [vmem:[%s3 + $0x150] sm:$0xff]
    %v92 = vld [vmem:[%s3 + $0x158] sm:$0xff]
    %v93 = vld [vmem:[%s3 + $0x160] sm:$0xff]
    %v94 = vld [vmem:[%s3 + $0x168] sm:$0xff]
    %v95 = vld [vmem:[%s3 + $0x170] sm:$0xff]
    %v96 = vld [vmem:[%s3 + $0x178] sm:$0xff]
    %v97 = vld [vmem:[%s3 + $0x180] sm:$0xff]
    %v98 = vld [vmem:[%s3 + $0x188] sm:$0xff]
    %v99 = vld [vmem:[%s3 + $0x190] sm:$0xff]
    %v100 = vld [vmem:[%s3 + $0x198] sm:$0xff]
    %v101 = vld [vmem:[%s3 + $0x1a0] sm:$0xff]
    %v102 = vld [vmem:[%s3 + $0x1a8] sm:$0xff]
    %v103 = vld [vmem:[%s3 + $0x1b0] sm:$0xff]
    %v104 = vld [vmem:[%s3 + $0x1b8] sm:$0xff]
    %v105 = vld [vmem:[%s3 + $0x1c0] sm:$0xff]
    %v106 = vld [vmem:[%s3 + $0x1c8] sm:$0xff]
    %v107 = vld [vmem:[%s3 + $0x1d0] sm:$0xff]
    %v108 = vld [vmem:[%s3 + $0x1d8] sm:$0xff]
    %v109 = vld [vmem:[%s3 + $0x1e0] sm:$0xff]
    %v110 = vld [vmem:[%s3 + $0x1e8] sm:$0xff]
    %v111 = vld [vmem:[%s3 + $0x1f0] sm:$0xff]
    %v112 = vld [vmem:[%s3 + $0x1f8] sm:$0xff]
    %v113 = vld [vmem:[%s3 + $0x200] sm:$0xff]
    %v114 = vld [vmem:[%s3 + $0x208] sm:$0xff]
    %v115 = vld [vmem:[%s3 + $0x210] sm:$0xff]
    %v116 = vld [vmem:[%s3 + $0x218] sm:$0xff]
    %v117 = vld [vmem:[%s3 + $0x220] sm:$0xff]
    %v118 = vld [vmem:[%s3 + $0x228] sm:$0xff]
    %v119 = vld [vmem:[%s3 + $0x230] sm:$0xff]
    %v120 = vld [vmem:[%s3 + $0x238] sm:$0xff]
    %v121 = vld [vmem:[%s3 + $0x240] sm:$0xff]
    %v122 = vld [vmem:[%s3 + $0x248] sm:$0xff]
    %v123 = vld [vmem:[%s3 + $0x250] sm:$0xff]
    %v124 = vld [vmem:[%s3 + $0x258] sm:$0xff]
    %v125 = vld [vmem:[%s3 + $0x260] sm:$0xff]
    %v126 = vld [vmem:[%s3 + $0x268] sm:$0xff]
    %v127 = vld [vmem:[%s3 + $0x270] sm:$0xff]
    %v128 = vld [vmem:[%s3 + $0x278] sm:$0xff]
    %v129 = vld [vmem:[%s3 + $0x280] sm:$0xff]
    %v130 = vld [vmem:[%s3 + $0x288] sm:$0xff]
    %v131 = vld [vmem:[%s3 + $0x290] sm:$0xff]
    %v132 = vld [vmem:[%s3 + $0x298] sm:$0xff]
    %v133 = vld [vmem:[%s3 + $0x2a0] sm:$0xff]
    %v134 = vld [vmem:[%s3 + $0x2a8] sm:$0xff]
    %v135 = vld [vmem:[%s3 + $0x2b0] sm:$0xff]
    %v136 = vld [vmem:[%s3 + $0x2b8] sm:$0xff]
    %v137 = vld [vmem:[%s3 + $0x2c0] sm:$0xff]
    %v138 = vld [vmem:[%s3 + $0x2c8] sm:$0xff]
    %v139 = vld [vmem:[%s3 + $0x2d0] sm:$0xff]
    %v140 = vld [vmem:[%s3 + $0x2d8] sm:$0xff]
    %v141 = vld [vmem:[%s3 + $0x2e0] sm:$0xff]
    %v142 = vld [vmem:[%s3 + $0x2e8] sm:$0xff]
    %v143 = vld [vmem:[%s3 + $0x2f0] sm:$0xff]
    %v144 = vld [vmem:[%s3 + $0x2f8] sm:$0xff]
    %v145 = vld [vmem:[%s3 + $0x300] sm:$0xff]
    %v146 = vld [vmem:[%s3 + $0x308] sm:$0xff]
    %v147 = vld [vmem:[%s3 + $0x310] sm:$0xff]
    %v148 = vld [vmem:[%s3 + $0x318] sm:$0xff]
    %v149 = vld [vmem:[%s3 + $0x320] sm:$0xff]
    %v150 = vld [vmem:[%s3 + $0x328] sm:$0xff]
    %v151 = vld [vmem:[%s3 + $0x330] sm:$0xff]
    %v152 = vld [vmem:[%s3 + $0x338] sm:$0xff]
    %v153 = vld [vmem:[%s3 + $0x340] sm:$0xff]
    %v154 = vld [vmem:[%s3 + $0x348] sm:$0xff]
    %v155 = vld [vmem:[%s3 + $0x350] sm:$0xff]
    %v156 = vld [vmem:[%s3 + $0x358] sm:$0xff]
    %v157 = vld [vmem:[%s3 + $0x360] sm:$0xff]
    %v158 = vld [vmem:[%s3 + $0x368] sm:$0xff]
    %v159 = vld [vmem:[%s3 + $0x370] sm:$0xff]
    %v160 = vld [vmem:[%s3 + $0x378] sm:$0xff]
    %v161 = vld [vmem:[%s3 + $0x380] sm:$0xff]
    %v162 = vld [vmem:[%s3 + $0x388] sm:$0xff]
    %v163 = vld [vmem:[%s3 + $0x390] sm:$0xff]
    %v164 = vld [vmem:[%s3 + $0x398] sm:$0xff]
    %v165 = vld [vmem:[%s3 + $0x3a0] sm:$0xff]
    %v166 = vld [vmem:[%s3 + $0x3a8] sm:$0xff]
    %v167 = vld [vmem:[%s3 + $0x3b0] sm:$0xff]
    %v168 = vld [vmem:[%s3 + $0x3b8] sm:$0xff]
    %v169 = vld [vmem:[%s3 + $0x3c0] sm:$0xff]
    %v170 = vld [vmem:[%s3 + $0x3c8] sm:$0xff]
    %v171 = vld [vmem:[%s3 + $0x3d0] sm:$0xff]
    %v172 = vld [vmem:[%s3 + $0x3d8] sm:$0xff]
    %v173 = vld [vmem:[%s3 + $0x3e0] sm:$0xff]
    %v174 = vld [vmem:[%s3 + $0x3e8] sm:$0xff]
    %v175 = vld [vmem:[%s3 + $0x3f0] sm:$0xff]
    %v176 = vld [vmem:[%s3 + $0x3f8] sm:$0xff]
    %v177 = vld [vmem:[%s4] sm:$0x1]
    %v179 = vlaneseq
    %v180 = vshrl.u32 %v179, 7
    %v181 = vsub.s32 0, %v180
    %v182 = vrot.slane %v177, %v181
    %184 = vmatprep.subr.mxu0 0.0
    %185 = vmatpush1.msra.mxu0 %v64
    %186 = vmatprep.subr.mxu0 0.0
    %187 = vmatpush1.msra.mxu0 %v63
    %188 = vmatprep.subr.mxu0 0.0
    %189 = vmatpush1.msra.mxu0 %v62
    %190 = vmatprep.subr.mxu0 0.0
    %191 = vmatpush1.msra.mxu0 %v61
    %192 = vmatprep.subr.mxu0 0.0
    %193 = vmatpush1.msra.mxu0 %v60
    %194 = vmatprep.subr.mxu0 0.0
    %195 = vmatpush1.msra.mxu0 %v59
    %196 = vmatprep.subr.mxu0 0.0
    %197 = vmatpush1.msra.mxu0 %v58
    %198 = vmatprep.subr.mxu0 0.0
    %199 = vmatpush1.msra.mxu0 %v57
    %200 = vmatprep.subr.mxu0 0.0
    %201 = vmatpush1.msra.mxu0 %v56
    %202 = vmatprep.subr.mxu0 0.0
    %203 = vmatpush1.msra.mxu0 %v55
    %204 = vmatprep.subr.mxu0 0.0
    %205 = vmatpush1.msra.mxu0 %v54
    %206 = vmatprep.subr.mxu0 0.0
    %207 = vmatpush1.msra.mxu0 %v53
    %208 = vmatprep.subr.mxu0 0.0
    %209 = vmatpush1.msra.mxu0 %v52
    %210 = vmatprep.subr.mxu0 0.0
    %211 = vmatpush1.msra.mxu0 %v51
    %212 = vmatprep.subr.mxu0 0.0
    %213 = vmatpush1.msra.mxu0 %v50
    %214 = vmatprep.subr.mxu0 0.0
    %215 = vmatpush1.msra.mxu0 %v49
    %216 = vmatprep.subr.mxu0 0.0
    %217 = vmatpush2.msra.mxu0 %v80
    %218 = vmatprep.subr.mxu0 0.0
    %219 = vmatpush2.msra.mxu0 %v79
    %220 = vmatprep.subr.mxu0 0.0
    %221 = vmatpush2.msra.mxu0 %v78
    %222 = vmatprep.subr.mxu0 0.0
    %223 = vmatpush2.msra.mxu0 %v77
    %224 = vmatprep.subr.mxu0 0.0
    %225 = vmatpush2.msra.mxu0 %v76
    %226 = vmatprep.subr.mxu0 0.0
    %227 = vmatpush2.msra.mxu0 %v75
    %228 = vmatprep.subr.mxu0 0.0
    %229 = vmatpush2.msra.mxu0 %v74
    %230 = vmatprep.subr.mxu0 0.0
    %231 = vmatpush2.msra.mxu0 %v73
    %232 = vmatprep.subr.mxu0 0.0
    %233 = vmatpush2.msra.mxu0 %v72
    %234 = vmatprep.subr.mxu0 0.0
    %235 = vmatpush2.msra.mxu0 %v71
    %236 = vmatprep.subr.mxu0 0.0
    %237 = vmatpush2.msra.mxu0 %v70
    %238 = vmatprep.subr.mxu0 0.0
    %239 = vmatpush2.msra.mxu0 %v69
    %240 = vmatprep.subr.mxu0 0.0
    %241 = vmatpush2.msra.mxu0 %v68
    %242 = vmatprep.subr.mxu0 0.0
    %243 = vmatpush2.msra.mxu0 %v67
    %244 = vmatprep.subr.mxu0 0.0
    %245 = vmatpush2.msra.mxu0 %v66
    %246 = vmatprep.subr.mxu0 0.0
    %247 = vmatpush2.msra.mxu0 %v65
    %248 = vmatprep.mubr.f32.mxu0 %v42
    %249 = vmatmul.mubr.f32.gmra.mxu0 %v41
    %v250 = vpop.f32.mrf.mxu0
    %v251 = vadd.f32 %v182, %v250
    %v252 = vpop.f32.mrf.mxu0
    %253 = vdwg.mxu0
    %254 = vmatprep.subr.mxu0 0.0
    %255 = vmatpush1.msra.mxu0 %v96
    %256 = vmatprep.subr.mxu0 0.0
    %257 = vmatpush1.msra.mxu0 %v95
    %258 = vmatprep.subr.mxu0 0.0
    %259 = vmatpush1.msra.mxu0 %v94
    %260 = vmatprep.subr.mxu0 0.0
    %261 = vmatpush1.msra.mxu0 %v93
    %262 = vmatprep.subr.mxu0 0.0
    %263 = vmatpush1.msra.mxu0 %v92
    %264 = vmatprep.subr.mxu0 0.0
    %265 = vmatpush1.msra.mxu0 %v91
    %266 = vmatprep.subr.mxu0 0.0
    %267 = vmatpush1.msra.mxu0 %v90
    %268 = vmatprep.subr.mxu0 0.0
    %269 = vmatpush1.msra.mxu0 %v89
    %270 = vmatprep.subr.mxu0 0.0
    %271 = vmatpush1.msra.mxu0 %v88
    %272 = vmatprep.subr.mxu0 0.0
    %273 = vmatpush1.msra.mxu0 %v87
    %274 = vmatprep.subr.mxu0 0.0
    %275 = vmatpush1.msra.mxu0 %v86
    %276 = vmatprep.subr.mxu0 0.0
    %277 = vmatpush1.msra.mxu0 %v85
    %278 = vmatprep.subr.mxu0 0.0
    %279 = vmatpush1.msra.mxu0 %v84
    %280 = vmatprep.subr.mxu0 0.0
    %281 = vmatpush1.msra.mxu0 %v83
    %282 = vmatprep.subr.mxu0 0.0
    %283 = vmatpush1.msra.mxu0 %v82
    %284 = vmatprep.subr.mxu0 0.0
    %285 = vmatpush1.msra.mxu0 %v81
    %286 = vmatprep.subr.mxu0 0.0
    %287 = vmatpush2.msra.mxu0 %v112
    %288 = vmatprep.subr.mxu0 0.0
    %289 = vmatpush2.msra.mxu0 %v111
    %290 = vmatprep.subr.mxu0 0.0
    %291 = vmatpush2.msra.mxu0 %v110
    %292 = vmatprep.subr.mxu0 0.0
    %293 = vmatpush2.msra.mxu0 %v109
    %294 = vmatprep.subr.mxu0 0.0
    %295 = vmatpush2.msra.mxu0 %v108
    %296 = vmatprep.subr.mxu0 0.0
    %297 = vmatpush2.msra.mxu0 %v107
    %298 = vmatprep.subr.mxu0 0.0
    %299 = vmatpush2.msra.mxu0 %v106
    %300 = vmatprep.subr.mxu0 0.0
    %301 = vmatpush2.msra.mxu0 %v105
    %302 = vmatprep.subr.mxu0 0.0
    %303 = vmatpush2.msra.mxu0 %v104
    %304 = vmatprep.subr.mxu0 0.0
    %305 = vmatpush2.msra.mxu0 %v103
    %306 = vmatprep.subr.mxu0 0.0
    %307 = vmatpush2.msra.mxu0 %v102
    %308 = vmatprep.subr.mxu0 0.0
    %309 = vmatpush2.msra.mxu0 %v101
    %310 = vmatprep.subr.mxu0 0.0
    %311 = vmatpush2.msra.mxu0 %v100
    %312 = vmatprep.subr.mxu0 0.0
    %313 = vmatpush2.msra.mxu0 %v99
    %314 = vmatprep.subr.mxu0 0.0
    %315 = vmatpush2.msra.mxu0 %v98
    %316 = vmatprep.subr.mxu0 0.0
    %317 = vmatpush2.msra.mxu0 %v97
    %318 = vmatprep.mubr.f32.mxu0 %v44
    %319 = vmatmul.mubr.f32.gmra.mxu0 %v43
    %v320 = vpop.f32.mrf.mxu0
    %v321 = vadd.f32 %v251, %v320
    %v322 = vpop.f32.mrf.mxu0
    %323 = vdwg.mxu0
    %324 = vmatprep.subr.mxu0 0.0
    %325 = vmatpush1.msra.mxu0 %v128
    %326 = vmatprep.subr.mxu0 0.0
    %327 = vmatpush1.msra.mxu0 %v127
    %328 = vmatprep.subr.mxu0 0.0
    %329 = vmatpush1.msra.mxu0 %v126
    %330 = vmatprep.subr.mxu0 0.0
    %331 = vmatpush1.msra.mxu0 %v125
    %332 = vmatprep.subr.mxu0 0.0
    %333 = vmatpush1.msra.mxu0 %v124
    %334 = vmatprep.subr.mxu0 0.0
    %335 = vmatpush1.msra.mxu0 %v123
    %336 = vmatprep.subr.mxu0 0.0
    %337 = vmatpush1.msra.mxu0 %v122
    %338 = vmatprep.subr.mxu0 0.0
    %339 = vmatpush1.msra.mxu0 %v121
    %340 = vmatprep.subr.mxu0 0.0
    %341 = vmatpush1.msra.mxu0 %v120
    %342 = vmatprep.subr.mxu0 0.0
    %343 = vmatpush1.msra.mxu0 %v119
    %344 = vmatprep.subr.mxu0 0.0
    %345 = vmatpush1.msra.mxu0 %v118
    %346 = vmatprep.subr.mxu0 0.0
    %347 = vmatpush1.msra.mxu0 %v117
    %348 = vmatprep.subr.mxu0 0.0
    %349 = vmatpush1.msra.mxu0 %v116
    %350 = vmatprep.subr.mxu0 0.0
    %351 = vmatpush1.msra.mxu0 %v115
    %352 = vmatprep.subr.mxu0 0.0
    %353 = vmatpush1.msra.mxu0 %v114
    %354 = vmatprep.subr.mxu0 0.0
    %355 = vmatpush1.msra.mxu0 %v113
    %356 = vmatprep.subr.mxu0 0.0
    %357 = vmatpush2.msra.mxu0 %v144
    %358 = vmatprep.subr.mxu0 0.0
    %359 = vmatpush2.msra.mxu0 %v143
    %360 = vmatprep.subr.mxu0 0.0
    %361 = vmatpush2.msra.mxu0 %v142
    %362 = vmatprep.subr.mxu0 0.0
    %363 = vmatpush2.msra.mxu0 %v141
    %364 = vmatprep.subr.mxu0 0.0
    %365 = vmatpush2.msra.mxu0 %v140
    %366 = vmatprep.subr.mxu0 0.0
    %367 = vmatpush2.msra.mxu0 %v139
    %368 = vmatprep.subr.mxu0 0.0
    %369 = vmatpush2.msra.mxu0 %v138
    %370 = vmatprep.subr.mxu0 0.0
    %371 = vmatpush2.msra.mxu0 %v137
    %372 = vmatprep.subr.mxu0 0.0
    %373 = vmatpush2.msra.mxu0 %v136
    %374 = vmatprep.subr.mxu0 0.0
    %375 = vmatpush2.msra.mxu0 %v135
    %376 = vmatprep.subr.mxu0 0.0
    %377 = vmatpush2.msra.mxu0 %v134
    %378 = vmatprep.subr.mxu0 0.0
    %379 = vmatpush2.msra.mxu0 %v133
    %380 = vmatprep.subr.mxu0 0.0
    %381 = vmatpush2.msra.mxu0 %v132
    %382 = vmatprep.subr.mxu0 0.0
    %383 = vmatpush2.msra.mxu0 %v131
    %384 = vmatprep.subr.mxu0 0.0
    %385 = vmatpush2.msra.mxu0 %v130
    %386 = vmatprep.subr.mxu0 0.0
    %387 = vmatpush2.msra.mxu0 %v129
    %388 = vmatprep.mubr.f32.mxu0 %v46
    %389 = vmatmul.mubr.f32.gmra.mxu0 %v45
    %v390 = vpop.f32.mrf.mxu0
    %v391 = vadd.f32 %v321, %v390
    %v392 = vpop.f32.mrf.mxu0
    %393 = vdwg.mxu0
    %394 = vmatprep.subr.mxu0 0.0
    %395 = vmatpush1.msra.mxu0 %v160
    %396 = vmatprep.subr.mxu0 0.0
    %397 = vmatpush1.msra.mxu0 %v159
    %398 = vmatprep.subr.mxu0 0.0
    %399 = vmatpush1.msra.mxu0 %v158
    %400 = vmatprep.subr.mxu0 0.0
    %401 = vmatpush1.msra.mxu0 %v157
    %402 = vmatprep.subr.mxu0 0.0
    %403 = vmatpush1.msra.mxu0 %v156
    %404 = vmatprep.subr.mxu0 0.0
    %405 = vmatpush1.msra.mxu0 %v155
    %406 = vmatprep.subr.mxu0 0.0
    %407 = vmatpush1.msra.mxu0 %v154
    %408 = vmatprep.subr.mxu0 0.0
    %409 = vmatpush1.msra.mxu0 %v153
    %410 = vmatprep.subr.mxu0 0.0
    %411 = vmatpush1.msra.mxu0 %v152
    %412 = vmatprep.subr.mxu0 0.0
    %413 = vmatpush1.msra.mxu0 %v151
    %414 = vmatprep.subr.mxu0 0.0
    %415 = vmatpush1.msra.mxu0 %v150
    %416 = vmatprep.subr.mxu0 0.0
    %417 = vmatpush1.msra.mxu0 %v149
    %418 = vmatprep.subr.mxu0 0.0
    %419 = vmatpush1.msra.mxu0 %v148
    %420 = vmatprep.subr.mxu0 0.0
    %421 = vmatpush1.msra.mxu0 %v147
    %422 = vmatprep.subr.mxu0 0.0
    %423 = vmatpush1.msra.mxu0 %v146
    %424 = vmatprep.subr.mxu0 0.0
    %425 = vmatpush1.msra.mxu0 %v145
    %426 = vmatprep.subr.mxu0 0.0
    %427 = vmatpush2.msra.mxu0 %v176
    %428 = vmatprep.subr.mxu0 0.0
    %429 = vmatpush2.msra.mxu0 %v175
    %430 = vmatprep.subr.mxu0 0.0
    %431 = vmatpush2.msra.mxu0 %v174
    %432 = vmatprep.subr.mxu0 0.0
    %433 = vmatpush2.msra.mxu0 %v173
    %434 = vmatprep.subr.mxu0 0.0
    %435 = vmatpush2.msra.mxu0 %v172
    %436 = vmatprep.subr.mxu0 0.0
    %437 = vmatpush2.msra.mxu0 %v171
    %438 = vmatprep.subr.mxu0 0.0
    %439 = vmatpush2.msra.mxu0 %v170
    %440 = vmatprep.subr.mxu0 0.0
    %441 = vmatpush2.msra.mxu0 %v169
    %442 = vmatprep.subr.mxu0 0.0
    %443 = vmatpush2.msra.mxu0 %v168
    %444 = vmatprep.subr.mxu0 0.0
    %445 = vmatpush2.msra.mxu0 %v167
    %446 = vmatprep.subr.mxu0 0.0
    %447 = vmatpush2.msra.mxu0 %v166
    %448 = vmatprep.subr.mxu0 0.0
    %449 = vmatpush2.msra.mxu0 %v165
    %450 = vmatprep.subr.mxu0 0.0
    %451 = vmatpush2.msra.mxu0 %v164
    %452 = vmatprep.subr.mxu0 0.0
    %453 = vmatpush2.msra.mxu0 %v163
    %454 = vmatprep.subr.mxu0 0.0
    %455 = vmatpush2.msra.mxu0 %v162
    %456 = vmatprep.subr.mxu0 0.0
    %457 = vmatpush2.msra.mxu0 %v161
    %458 = vmatprep.mubr.f32.mxu0 %v48
    %459 = vmatmul.mubr.f32.gmra.mxu0 %v47
    %v460 = vpop.f32.mrf.mxu0
    %v461 = vadd.f32 %v391, %v460
    %v462 = vpop.f32.mrf.mxu0
    %463 = vdwg.mxu0
    %v464 = vmax.f32 %v461, 0.0
    %v465 = vld [vmem:[%s1] sm:$0xff]
    %v466 = vld [vmem:[%s5] sm:$0xf]
    %v467 = vld [vmem:[%s6] sm:$0x1]
    %469 = vset.pattern.permute.xlu0 0
    %470 = vperm.xlu0 %469, %v465
    %v471 = vpop.permute.xlu0 %470
    %v473 = vlaneseq
    %v474 = vshrl.u32 %v473, 7
    %v475 = vsub.s32 0, %v474
    %v476 = vrot.slane %v466, %v475
    %v477 = vmul.f32 %v471, %v476
    %v479 = vlaneseq
    %v480 = vshrl.u32 %v479, 7
    %v481 = vsub.s32 0, %v480
    %v482 = vrot.slane %v467, %v481
    %v484 = vadd.f32 %v482, %v477
    %485 = vset.pattern.permute.xlu0 1
    %486 = vperm.xlu0 %485, %v465
    %v487 = vpop.permute.xlu0 %486
    %v489 = vlaneseq
    %v490 = vshrl.u32 %v489, 7
    %v491 = vsub.s32 1, %v490
    %v492 = vrot.slane %v466, %v491
    %v493 = vmul.f32 %v487, %v492
    %v494 = vadd.f32 %v484, %v493
    %495 = vset.pattern.permute.xlu0 2
    %496 = vperm.xlu0 %495, %v465
    %v497 = vpop.permute.xlu0 %496
    %v499 = vlaneseq
    %v500 = vshrl.u32 %v499, 7
    %v501 = vsub.s32 2, %v500
    %v502 = vrot.slane %v466, %v501
    %v503 = vmul.f32 %v497, %v502
    %v504 = vadd.f32 %v494, %v503
    %505 = vset.pattern.permute.xlu0 3
    %506 = vperm.xlu0 %505, %v465
    %v507 = vpop.permute.xlu0 %506
    %v509 = vlaneseq
    %v510 = vshrl.u32 %v509, 7
    %v511 = vsub.s32 3, %v510
    %v512 = vrot.slane %v466, %v511
    %v513 = vmul.f32 %v507, %v512
    %v514 = vadd.f32 %v504, %v513
    %v515 = vmax.f32 %v514, 0.0
    %517 = vrot.lane.b32.xlu0 %v515, 32
    %v518 = vpop.permute.xlu0 %517
    %vm520 = vcmask 261120
    %v521 = vsel %vm520, %v464, %v518
    %v522 = vld [vmem:[%s7] sm:$0xff]
    %v523 = vld [vmem:[%s7 + $0x8] sm:$0xff]
    %v524 = vld [vmem:[%s7 + $0x10] sm:$0xff]
    %v525 = vld [vmem:[%s7 + $0x18] sm:$0xff]
    %v526 = vld [vmem:[%s7 + $0x20] sm:$0xff]
    %v527 = vld [vmem:[%s7 + $0x28] sm:$0xff]
    %v528 = vld [vmem:[%s7 + $0x30] sm:$0xff]
    %v529 = vld [vmem:[%s7 + $0x38] sm:$0xff]
    %v530 = vld [vmem:[%s8] sm:$0x1]
    %v532 = vlaneseq
    %v533 = vshrl.u32 %v532, 7
    %v534 = vsub.s32 0, %v533
    %v535 = vrot.slane %v530, %v534
    %vm537 = vcmask 523264
    %v539 = vsel %vm537, %v521, 0
    %541 = vmatprep.subr.mxu0 0.0
    %542 = vmatpush1.msra.mxu0 0.0
    %543 = vmatprep.subr.mxu0 0.0
    %544 = vmatpush1.msra.mxu0 0.0
    %545 = vmatprep.subr.mxu0 0.0
    %546 = vmatpush1.msra.mxu0 0.0
    %547 = vmatprep.subr.mxu0 0.0
    %548 = vmatpush1.msra.mxu0 0.0
    %549 = vmatprep.subr.mxu0 0.0
    %550 = vmatpush1.msra.mxu0 0.0
    %551 = vmatprep.subr.mxu0 0.0
    %552 = vmatpush1.msra.mxu0 0.0
    %553 = vmatprep.subr.mxu0 0.0
    %554 = vmatpush1.msra.mxu0 0.0
    %555 = vmatprep.subr.mxu0 0.0
    %556 = vmatpush1.msra.mxu0 0.0
    %557 = vmatprep.subr.mxu0 0.0
    %558 = vmatpush1.msra.mxu0 %v529
    %559 = vmatprep.subr.mxu0 0.0
    %560 = vmatpush1.msra.mxu0 %v528
    %561 = vmatprep.subr.mxu0 0.0
    %562 = vmatpush1.msra.mxu0 %v527
    %563 = vmatprep.subr.mxu0 0.0
    %564 = vmatpush1.msra.mxu0 %v526
    %565 = vmatprep.subr.mxu0 0.0
    %566 = vmatpush1.msra.mxu0 %v525
    %567 = vmatprep.subr.mxu0 0.0
    %568 = vmatpush1.msra.mxu0 %v524
    %569 = vmatprep.subr.mxu0 0.0
    %570 = vmatpush1.msra.mxu0 %v523
    %571 = vmatprep.subr.mxu0 0.0
    %572 = vmatpush1.msra.mxu0 %v522
    %573 = vmatprep.subr.mxu0 0.0
    %574 = vmatpush2.msra.mxu0 0.0
    %575 = vmatprep.subr.mxu0 0.0
    %576 = vmatpush2.msra.mxu0 0.0
    %577 = vmatprep.subr.mxu0 0.0
    %578 = vmatpush2.msra.mxu0 0.0
    %579 = vmatprep.subr.mxu0 0.0
    %580 = vmatpush2.msra.mxu0 0.0
    %581 = vmatprep.subr.mxu0 0.0
    %582 = vmatpush2.msra.mxu0 0.0
    %583 = vmatprep.subr.mxu0 0.0
    %584 = vmatpush2.msra.mxu0 0.0
    %585 = vmatprep.subr.mxu0 0.0
    %586 = vmatpush2.msra.mxu0 0.0
    %587 = vmatprep.subr.mxu0 0.0
    %588 = vmatpush2.msra.mxu0 0.0
    %589 = vmatprep.subr.mxu0 0.0
    %590 = vmatpush2.msra.mxu0 0.0
    %591 = vmatprep.subr.mxu0 0.0
    %592 = vmatpush2.msra.mxu0 0.0
    %593 = vmatprep.subr.mxu0 0.0
    %594 = vmatpush2.msra.mxu0 0.0
    %595 = vmatprep.subr.mxu0 0.0
    %596 = vmatpush2.msra.mxu0 0.0
    %597 = vmatprep.subr.mxu0 0.0
    %598 = vmatpush2.msra.mxu0 0.0
    %599 = vmatprep.subr.mxu0 0.0
    %600 = vmatpush2.msra.mxu0 0.0
    %601 = vmatprep.subr.mxu0 0.0
    %602 = vmatpush2.msra.mxu0 0.0
    %603 = vmatprep.subr.mxu0 0.0
    %604 = vmatpush2.msra.mxu0 0.0
    %605 = vmatprep.mubr.f32.mxu0 0.0
    %606 = vmatmul.mubr.f32.gmra.mxu0 %v539
    %v607 = vpop.f32.mrf.mxu0
    %v608 = vadd.f32 %v535, %v607
    %v609 = vpop.f32.mrf.mxu0
    %610 = vdwg.mxu0
    %v611 = vmax.f32 %v608, 0.0
    %v612 = vld [vmem:[%s9] sm:$0xff]
    %v613 = vld [vmem:[%s9 + $0x8] sm:$0xff]
    %v614 = vld [vmem:[%s9 + $0x10] sm:$0xff]
    %v615 = vld [vmem:[%s9 + $0x18] sm:$0xff]
    %v616 = vld [vmem:[%s10] sm:$0x1]
    %v618 = vlaneseq
    %v619 = vshrl.u32 %v618, 7
    %v620 = vsub.s32 0, %v619
    %v621 = vrot.slane %v616, %v620
    %v624 = vsel %vm520, %v611, 0
    %626 = vmatprep.subr.mxu0 0.0
    %627 = vmatpush1.msra.mxu0 0.0
    %628 = vmatprep.subr.mxu0 0.0
    %629 = vmatpush1.msra.mxu0 0.0
    %630 = vmatprep.subr.mxu0 0.0
    %631 = vmatpush1.msra.mxu0 0.0
    %632 = vmatprep.subr.mxu0 0.0
    %633 = vmatpush1.msra.mxu0 0.0
    %634 = vmatprep.subr.mxu0 0.0
    %635 = vmatpush1.msra.mxu0 0.0
    %636 = vmatprep.subr.mxu0 0.0
    %637 = vmatpush1.msra.mxu0 0.0
    %638 = vmatprep.subr.mxu0 0.0
    %639 = vmatpush1.msra.mxu0 0.0
    %640 = vmatprep.subr.mxu0 0.0
    %641 = vmatpush1.msra.mxu0 0.0
    %642 = vmatprep.subr.mxu0 0.0
    %643 = vmatpush1.msra.mxu0 0.0
    %644 = vmatprep.subr.mxu0 0.0
    %645 = vmatpush1.msra.mxu0 0.0
    %646 = vmatprep.subr.mxu0 0.0
    %647 = vmatpush1.msra.mxu0 0.0
    %648 = vmatprep.subr.mxu0 0.0
    %649 = vmatpush1.msra.mxu0 0.0
    %650 = vmatprep.subr.mxu0 0.0
    %651 = vmatpush1.msra.mxu0 %v615
    %652 = vmatprep.subr.mxu0 0.0
    %653 = vmatpush1.msra.mxu0 %v614
    %654 = vmatprep.subr.mxu0 0.0
    %655 = vmatpush1.msra.mxu0 %v613
    %656 = vmatprep.subr.mxu0 0.0
    %657 = vmatpush1.msra.mxu0 %v612
    %658 = vmatprep.subr.mxu0 0.0
    %659 = vmatpush2.msra.mxu0 0.0
    %660 = vmatprep.subr.mxu0 0.0
    %661 = vmatpush2.msra.mxu0 0.0
    %662 = vmatprep.subr.mxu0 0.0
    %663 = vmatpush2.msra.mxu0 0.0
    %664 = vmatprep.subr.mxu0 0.0
    %665 = vmatpush2.msra.mxu0 0.0
    %666 = vmatprep.subr.mxu0 0.0
    %667 = vmatpush2.msra.mxu0 0.0
    %668 = vmatprep.subr.mxu0 0.0
    %669 = vmatpush2.msra.mxu0 0.0
    %670 = vmatprep.subr.mxu0 0.0
    %671 = vmatpush2.msra.mxu0 0.0
    %672 = vmatprep.subr.mxu0 0.0
    %673 = vmatpush2.msra.mxu0 0.0
    %674 = vmatprep.subr.mxu0 0.0
    %675 = vmatpush2.msra.mxu0 0.0
    %676 = vmatprep.subr.mxu0 0.0
    %677 = vmatpush2.msra.mxu0 0.0
    %678 = vmatprep.subr.mxu0 0.0
    %679 = vmatpush2.msra.mxu0 0.0
    %680 = vmatprep.subr.mxu0 0.0
    %681 = vmatpush2.msra.mxu0 0.0
    %682 = vmatprep.subr.mxu0 0.0
    %683 = vmatpush2.msra.mxu0 0.0
    %684 = vmatprep.subr.mxu0 0.0
    %685 = vmatpush2.msra.mxu0 0.0
    %686 = vmatprep.subr.mxu0 0.0
    %687 = vmatpush2.msra.mxu0 0.0
    %688 = vmatprep.subr.mxu0 0.0
    %689 = vmatpush2.msra.mxu0 0.0
    %690 = vmatprep.mubr.f32.mxu0 0.0
    %691 = vmatmul.mubr.f32.gmra.mxu0 %v624
    %v692 = vpop.f32.mrf.mxu0
    %v693 = vadd.f32 %v621, %v692
    %v694 = vpop.f32.mrf.mxu0
    %695 = vdwg.mxu0
    %vm696 = vcmask 64512
    %697 = vst.msk [vmem:[#allocation2] sm:$0xff] %vm696, %v693
    %v698 = vsel %vm696, %v693, -inf
    %699 = vmax.xlane.f32.xlu0 %v698
    %v700 = vpop.xlane.xlu0 %699
    %v701 = vsub.f32 %v693, %v700
    %v702 = vmul.f32 %v701, 1.442695
    %v703 = vpow.pop %v702
    %v704 = vsel %vm696, %v703, 0.0
    %705 = vadd.xlane.f32.xlu0 %v704
    %v706 = vpop.xlane.xlu0 %705
    %v707 = vrcp.pop %v706
    %v708 = vmul.f32 %v703, %v707
    %v709 = vadd.f32 %v708, 0.001
    %v710 = vlog2.pop %v709
    %v711 = vmul.f32 %v710, 0.6931472
    %v712 = vld [vmem:[%s2] sm:$0xff]
    %v713 = vadd.f32 %v711, %v712
    %v714 = vsel %vm696, %v713, -inf
    %715 = vmax.xlane.f32.xlu0 %v714
    %v716 = vpop.xlane.xlu0 %715
    %v717 = vlaneseq
    %v718 = vand.u32 %v717, 127
    %vm719 = vcmp.ge.f32.partialorder %v713, %v716
    %v720 = vsel %vm719, %v718, 4294967295
    %v721 = vsel %vm696, %v720, 2147483648
    %v722 = vand.u32 %v721, 65535
    %v723 = vshra.s32 %v721, 16
    %v724 = vcvt.s32.f32 %v722
    %v725 = vcvt.s32.f32 %v723
    %726 = vmax.xlane.f32.xlu0 %v725
    %v727 = vpop.xlane.xlu0 %726
    %vm728 = vcmp.eq.f32.partialorder %v725, %v727
    %v729 = vsel %vm728, %v724, -inf
    %730 = vmax.xlane.f32.xlu0 %v729
    %v731 = vpop.xlane.xlu0 %730
    %v732 = vcvt.f32.s32 %v731
    %v733 = vcvt.f32.s32 %v727
    %v734 = vshll.u32 %v733, 16
    %v735 = vadd.s32 %v734, %v732
    %vm736 = vcmask 7168
    %737 = vst.msk [vmem:[%s12] sm:$0xff] %vm736, %v735
    // Predicated region
    $region46: #{tpu_custom_call.1} parent=1 // pred_check
      _
    $region47: #{tpu_custom_call.1} parent=1 // pred_check_branch
      %739 = sbr.rel (0) target = $region49
    $region48: #{tpu_custom_call.1} parent=1 // pred_region
      %s741 = ssub.s32 128, 128
      %742 = vsyncadd [#allocation3], %s741
      %s744 = sshll.u32 [#allocation2], 4
      %s745 = int_to_ptr.vmem [resolvable:$true] %s744
      %747 = dma.vmem_to_hbm [thread:$0]  %s745, 128, %s11, [#allocation3]
    $region49: #{tpu_custom_call.1} parent=1 // pred_fallthru
      _
    // Predicated region
    $region50: #{tpu_custom_call.1} parent=1 // pred_check
      _
    $region51: #{tpu_custom_call.1} parent=1 // pred_check_branch
      %749 = sbr.rel (0) target = $region53
    $region52: #{tpu_custom_call.1} parent=1 // pred_region
      _
    $region53: #{tpu_custom_call.1} parent=1 // pred_fallthru
      _
    // Predicated region
    $region54: #{tpu_custom_call.1} parent=1 // pred_check
      _
    $region55: #{tpu_custom_call.1} parent=1 // pred_check_branch
      %751 = sbr.rel (0) target = $region57
    $region56: #{tpu_custom_call.1} parent=1 // pred_region
      %752 = dma.done [#allocation3], 128
    $region57: #{tpu_custom_call.1} parent=1 // pred_fallthru
      _
    // Predicated region
    $region58: #{tpu_custom_call.1} parent=1 // pred_check
      _
    $region59: #{tpu_custom_call.1} parent=1 // pred_check_branch
      %754 = sbr.rel (0) target = $region61
    $region60: #{tpu_custom_call.1} parent=1 // pred_region
      _
    $region61: #{tpu_custom_call.1} parent=1 // pred_fallthru
      _
    %755 = vsyncpa [#allocation3], 1

</llo_original>
